<compile_context>
chip_gen: v7x
topology: tpu7x:2x2x1
jax: 0.10.0
libtpu: 0.0.40
codegen_flags: <defaults>
</compile_context>

<pallas_src>
import functools

import jax
import jax.numpy as jnp
from jax.experimental import pallas as pl
from jax.experimental.pallas import tpu as pltpu

LANE = 128
SUBLANE = 8
NEG_BIG = -1e30  # bias for padded class columns -> exp() == 0 under softmax


def _round_up(x, m):
    return ((x + m - 1) // m) * m


def _pad_axis(x, axis, target, value=0):
    pad = target - x.shape[axis]
    if pad <= 0:
        return x
    widths = [(0, 0)] * x.ndim
    widths[axis] = (0, pad)
    return jnp.pad(x, widths, constant_values=value)


def _block_spec(shape, index_map, *, n_buffers=None):
    """BlockSpec; grid-invariant operands get an explicit single buffer."""
    if n_buffers is not None and hasattr(pl, "Buffered"):
        try:
            return pl.BlockSpec(shape, index_map,
                                pipeline_mode=pl.Buffered(n_buffers))
        except TypeError:   # older jax without pipeline_mode kwarg
            pass
    return pl.BlockSpec(shape, index_map)


def _choose_tb(B):
    """Batch tile: small B -> one tile; large B -> 128..512 rows, >=2 tiles."""
    if B <= LANE:
        return _round_up(B, SUBLANE)
    n_tiles = max(2, -(-B // 512))                 # ceil(B/512), at least 2
    tb = _round_up(-(-B // n_tiles), SUBLANE)      # ceil(B/n_tiles), sublane
    return max(LANE, min(512, tb))


def mlp_kernel(s_idx_ref, a_idx_ref, tbl_ref, b0_ref,
               wl_ref, bl_ref, wo_ref, bo_ref, out_ref, *, n_rest, nsp):
    """One batch tile; weights/tables are VMEM-resident across grid steps."""
    f32 = jnp.float32
    cdt = tbl_ref.dtype                      # compute (MXU input) dtype
    TB = s_idx_ref.shape[0]
    NV = tbl_ref.shape[0]                    # NSP + NAP (padded fused vocab)

    # Fused embedding lookup + concat + Linear0: a single "two-hot" row picks
    # s_proj[state] + a_proj[action] from the fused table in one MXU matmul.
    lanes = jax.lax.broadcasted_iota(jnp.int32, (TB, NV), 1)
    twohot = ((lanes == s_idx_ref[...]) |
              (lanes == (a_idx_ref[...] + nsp))).astype(cdt)        # (TB, NV)
    h = jnp.dot(twohot, tbl_ref[...], preferred_element_type=f32)   # (TB, DP)
    h = jnp.maximum(h + b0_ref[...], 0.0)

    # Remaining TraditionalLayers: Linear (weights pre-transposed) + ReLU.
    for l in range(n_rest):
        h = jnp.maximum(
            jnp.dot(h.astype(cdt), wl_ref[l], preferred_element_type=f32)
            + bl_ref[l], 0.0)

    # Output Linear -> softmax. Padded class columns carry a -1e30 bias so they
    # contribute exp(...) == 0; the wrapper slices the real classes out.
    logits = (jnp.dot(h.astype(cdt), wo_ref[...], preferred_element_type=f32)
              + bo_ref[...])
    m = jnp.max(logits, axis=-1, keepdims=True)
    e = jnp.exp(logits - m)
    denom = jnp.sum(e, axis=-1, keepdims=True)
    out_ref[...] = e * pl.reciprocal(denom, approx=False)


def mlp_forward(states, actions, params, *, compute_dtype=jnp.float32):
    s_tbl, a_tbl, wl, bl, wo, bo = params
    n_layers, D, _ = wl.shape
    d_hidden = s_tbl.shape[1]
    assert D == 2 * d_hidden
    assert n_layers >= 1, "kernel folds layer 0 into the embedding tables"
    n_states, n_actions, n_classes = s_tbl.shape[0], a_tbl.shape[0], wo.shape[0]

    f32 = jnp.float32
    DP = _round_up(D, LANE)
    NSP = _round_up(n_states, LANE)
    NAP = _round_up(n_actions, LANE)
    NV = NSP + NAP
    NCP = _round_up(n_classes, LANE)

    # ---- fold layer 0 into the embedding tables, fuse into ONE table --------
    w0, b0 = wl[0].astype(f32), bl[0].astype(f32)          # (D, D) out-in, (1, D)
    s_proj = s_tbl.astype(f32) @ w0[:, :d_hidden].T        # (n_states, D)
    a_proj = a_tbl.astype(f32) @ w0[:, d_hidden:].T        # (n_actions, D)
    s_proj_p = _pad_axis(_pad_axis(s_proj, 0, NSP), 1, DP)
    a_proj_p = _pad_axis(_pad_axis(a_proj, 0, NAP), 1, DP)
    tbl_p = jnp.concatenate([s_proj_p, a_proj_p], axis=0).astype(compute_dtype)
    b0_p = _pad_axis(b0, 1, DP)                             # f32 bias

    # ---- remaining hidden layers, pre-transposed to (in, out), zero-padded --
    n_rest = n_layers - 1
    if n_rest > 0:
        wl_rest = jnp.transpose(wl[1:].astype(f32), (0, 2, 1))  # (n_rest, in, out)
        bl_rest = bl[1:].astype(f32)                            # (n_rest, 1, D)
    else:   # dummy (never read: loop trip count is n_rest)
        wl_rest = jnp.zeros((1, D, D), f32)
        bl_rest = jnp.zeros((1, 1, D), f32)
    wl_rest_p = _pad_axis(_pad_axis(wl_rest, 1, DP), 2, DP).astype(compute_dtype)
    bl_rest_p = _pad_axis(bl_rest, 2, DP)                        # f32 biases
    n_rest_eff = wl_rest_p.shape[0]

    # ---- output projection, pre-transposed; padded classes get -1e30 bias ---
    wo_t_p = _pad_axis(_pad_axis(wo.astype(f32).T, 0, DP), 1, NCP).astype(compute_dtype)
    bo_p = _pad_axis(bo.astype(f32), 1, NCP, value=NEG_BIG)

    # ---- batch tiling --------------------------------------------------------
    B = states.shape[0]
    TB = _choose_tb(B)
    B_pad = _round_up(B, TB)
    s_idx = _pad_axis(states.reshape(B, 1).astype(jnp.int32), 0, B_pad)
    a_idx = _pad_axis(actions.reshape(B, 1).astype(jnp.int32), 0, B_pad)

    batch2 = lambda i: (i, 0)
    resident2 = lambda i: (0, 0)
    resident3 = lambda i: (0, 0, 0)

    # ---- VMEM budget / cost estimate ----------------------------------------
    itemsize = jnp.dtype(compute_dtype).itemsize
    resident_bytes = (NV * DP * itemsize                    # fused table
                      + n_rest_eff * DP * DP * itemsize     # hidden weights
                      + DP * NCP * itemsize                 # output weights
                      + (DP + n_rest_eff * DP + NCP) * 4)   # f32 biases
    per_tile_bytes = 2 * (2 * TB * 4 + TB * NCP * 4)        # dbl-buf idx + out
    work_bytes = TB * (NV + DP + NCP) * 4                   # twohot + h + logits
    vmem_limit = int(min(max(2 * (resident_bytes + per_tile_bytes + work_bytes)
                             + (2 << 20), 32 << 20), 64 << 20))
    flops = 2 * B_pad * (NV * DP + n_rest * DP * DP + DP * NCP)
    cost = pl.CostEstimate(
        flops=int(flops),
        transcendentals=int(B_pad * NCP),
        bytes_accessed=int(resident_bytes + B_pad * 2 * 4 + B_pad * NCP * 4))

    kernel = functools.partial(mlp_kernel, n_rest=n_rest, nsp=NSP)
    out = pl.pallas_call(
        kernel,
        out_shape=jax.ShapeDtypeStruct((B_pad, NCP), f32),
        grid_spec=pltpu.PrefetchScalarGridSpec(
            num_scalar_prefetch=0,
            grid=(B_pad // TB,),
            in_specs=[
                pl.BlockSpec((TB, 1), batch2),                              # state idx
                pl.BlockSpec((TB, 1), batch2),                              # action idx
                _block_spec((NV, DP), resident2, n_buffers=1),              # fused table
                _block_spec((1, DP), resident2, n_buffers=1),               # layer-0 bias
                _block_spec(wl_rest_p.shape, resident3, n_buffers=1),       # hidden W (in,out)
                _block_spec(bl_rest_p.shape, resident3, n_buffers=1),       # hidden b
                _block_spec((DP, NCP), resident2, n_buffers=1),             # output W (in,out)
                _block_spec((1, NCP), resident2, n_buffers=1),              # output b (-1e30 pad)
            ],
            out_specs=pl.BlockSpec((TB, NCP), batch2),
        ),
        compiler_params=pltpu.CompilerParams(
            dimension_semantics=("parallel",),
            vmem_limit_bytes=vmem_limit),
        cost_estimate=cost,
    )(s_idx, a_idx, tbl_p, b0_p, wl_rest_p, bl_rest_p, wo_t_p, bo_p)

    return out[:B, :n_classes]


def make_params(key, *, n_states, n_actions, d_hidden, n_layers):
    """Deterministic synthetic parameters (PyTorch-like init schemes)."""
    D = 2 * d_hidden
    ks = jax.random.split(key, 6)
    s_tbl = jax.random.normal(ks[0], (n_states, d_hidden), jnp.float32)
    a_tbl = jax.random.normal(ks[1], (n_actions, d_hidden), jnp.float32)
    lim = 1.0 / jnp.sqrt(D)
    wl = jax.random.uniform(ks[2], (n_layers, D, D), jnp.float32, -lim, lim)
    bl = jax.random.uniform(ks[3], (n_layers, 1, D), jnp.float32, -lim, lim)
    wo = jax.random.uniform(ks[4], (n_states, D), jnp.float32, -lim, lim)
    bo = jax.random.uniform(ks[5], (1, n_states), jnp.float32, -lim, lim)
    return s_tbl, a_tbl, wl, bl, wo, bo


def mlp_reference(states, actions, params):
    """Pure-JAX reference mirroring the PyTorch forward."""
    s_tbl, a_tbl, wl, bl, wo, bo = params
    x = jnp.concatenate([s_tbl[states], a_tbl[actions]], axis=1)
    for l in range(wl.shape[0]):
        x = jnp.maximum(x @ wl[l].T + bl[l], 0.0)
    logits = x @ wo.T + bo
    return jax.nn.softmax(logits, axis=1)


if __name__ == "__main__":
    # args: n_states=16, n_actions=4, d_hidden=32, n_layers=2, dropout (eval: identity)
    n_states, n_actions, d_hidden, n_layers = 16, 4, 32, 2

    key = jax.random.PRNGKey(0)
    k_params, k_s, k_a, k_s2, k_a2 = jax.random.split(key, 5)
    params = make_params(k_params, n_states=n_states, n_actions=n_actions,
                         d_hidden=d_hidden, n_layers=n_layers)

    # --- small batch (single tile), f32 path: tight tolerance ----------------
    batch = 8
    states = jax.random.randint(k_s, (batch,), 0, n_states, dtype=jnp.int32)
    actions = jax.random.randint(k_a, (batch,), 0, n_actions, dtype=jnp.int32)
    out = jax.block_until_ready(mlp_forward(states, actions, params))
    ref = mlp_reference(states, actions, params)
    assert out.shape == (batch, n_states)
    assert jnp.allclose(out, ref, atol=1e-5, rtol=1e-5), "mismatch vs JAX reference"
    assert jnp.allclose(out.sum(axis=1), 1.0, atol=1e-5), "softmax rows must sum to 1"

    # --- larger batch: exercises multi-tile grid (>=2 steps -> v7x megacore) -
    batch2 = 300
    states2 = jax.random.randint(k_s2, (batch2,), 0, n_states, dtype=jnp.int32)
    actions2 = jax.random.randint(k_a2, (batch2,), 0, n_actions, dtype=jnp.int32)
    out2 = jax.block_until_ready(mlp_forward(states2, actions2, params))
    ref2 = mlp_reference(states2, actions2, params)
    assert out2.shape == (batch2, n_states)
    assert jnp.allclose(out2, ref2, atol=1e-5, rtol=1e-5), "multi-tile mismatch"

    # --- bf16 MXU-input path (v6e/v7x perf option): looser tolerance ---------
    out_bf16 = jax.block_until_ready(
        mlp_forward(states, actions, params, compute_dtype=jnp.bfloat16))
    assert jnp.allclose(out_bf16, ref, atol=5e-2), "bf16 path mismatch"

    print("KERNEL_OK")
</pallas_src>

<mosaic_0001>
module attributes {stable_mosaic.version = 11 : i64} {
  func.func @mlp_kernel(%arg0: i32, %arg1: memref<8x1xi32, #tpu.memory_space<vmem>>, %arg2: memref<8x1xi32, #tpu.memory_space<vmem>>, %arg3: memref<256x128xf32, #tpu.memory_space<vmem>>, %arg4: memref<1x128xf32, #tpu.memory_space<vmem>>, %arg5: memref<1x128x128xf32, #tpu.memory_space<vmem>>, %arg6: memref<1x1x128xf32, #tpu.memory_space<vmem>>, %arg7: memref<128x128xf32, #tpu.memory_space<vmem>>, %arg8: memref<1x128xf32, #tpu.memory_space<vmem>>, %arg9: memref<8x128xf32, #tpu.memory_space<vmem>>) attributes {dimension_semantics = [#tpu.dimension_semantics<parallel>], iteration_bounds = array<i64: 1>, scalar_prefetch = 0 : i64, scratch_operands = 0 : i64, tpu.core_type = #tpu.core_type<tc>, window_params = [{transform_indices = @transform_0, window_bounds = array<i64: 8, 1>}, {transform_indices = @transform_1, window_bounds = array<i64: 8, 1>}, {pipeline_mode = #tpu.pipeline_mode<synchronous>, transform_indices = @transform_2, window_bounds = array<i64: 256, 128>}, {pipeline_mode = #tpu.pipeline_mode<synchronous>, transform_indices = @transform_3, window_bounds = array<i64: 1, 128>}, {pipeline_mode = #tpu.pipeline_mode<synchronous>, transform_indices = @transform_4, window_bounds = array<i64: 1, 128, 128>}, {pipeline_mode = #tpu.pipeline_mode<synchronous>, transform_indices = @transform_5, window_bounds = array<i64: 1, 1, 128>}, {pipeline_mode = #tpu.pipeline_mode<synchronous>, transform_indices = @transform_6, window_bounds = array<i64: 128, 128>}, {pipeline_mode = #tpu.pipeline_mode<synchronous>, transform_indices = @transform_7, window_bounds = array<i64: 1, 128>}, {transform_indices = @transform_8, window_bounds = array<i64: 8, 128>}]} {
    %0 = tpu.iota {dimensions = array<i32: 1>} : vector<8x256xi32>
    %c0 = arith.constant 0 : index
    %c0_0 = arith.constant 0 : index
    %1 = vector.load %arg1[%c0, %c0_0] : memref<8x1xi32, #tpu.memory_space<vmem>>, vector<8x1xi32>
    %2 = vector.broadcast %1 : vector<8x1xi32> to vector<8x256xi32>
    %3 = arith.cmpi eq, %0, %2 : vector<8x256xi32>
    %c0_1 = arith.constant 0 : index
    %c0_2 = arith.constant 0 : index
    %4 = vector.load %arg2[%c0_1, %c0_2] : memref<8x1xi32, #tpu.memory_space<vmem>>, vector<8x1xi32>
    %c128_i32 = arith.constant 128 : i32
    %5 = vector.broadcast %c128_i32 : i32 to vector<8x1xi32>
    %6 = arith.addi %4, %5 : vector<8x1xi32>
    %7 = vector.broadcast %6 : vector<8x1xi32> to vector<8x256xi32>
    %8 = arith.cmpi eq, %0, %7 : vector<8x256xi32>
    %9 = arith.ori %3, %8 : vector<8x256xi1>
    %10 = arith.extui %9 : vector<8x256xi1> to vector<8x256xi32>
    %11 = arith.sitofp %10 : vector<8x256xi32> to vector<8x256xf32>
    %c0_3 = arith.constant 0 : index
    %c0_4 = arith.constant 0 : index
    %12 = vector.load %arg3[%c0_3, %c0_4] : memref<256x128xf32, #tpu.memory_space<vmem>>, vector<256x128xf32>
    %cst = arith.constant dense<0.000000e+00> : vector<8x128xf32>
    %13 = tpu.matmul %11, %12, %cst {dimension_numbers = #tpu.dot_dimension_numbers<[1], [0], [0], [1], [0, 0, 1, 1], [], []>} : vector<8x256xf32>, vector<256x128xf32>, vector<8x128xf32> -> vector<8x128xf32>
    %c0_5 = arith.constant 0 : index
    %c0_6 = arith.constant 0 : index
    %14 = vector.load %arg4[%c0_5, %c0_6] : memref<1x128xf32, #tpu.memory_space<vmem>>, vector<1x128xf32>
    %15 = vector.broadcast %14 : vector<1x128xf32> to vector<8x128xf32>
    %16 = arith.addf %13, %15 : vector<8x128xf32>
    %cst_7 = arith.constant 0.000000e+00 : f32
    %17 = vector.broadcast %cst_7 : f32 to vector<8x128xf32>
    %18 = arith.maximumf %16, %17 : vector<8x128xf32>
    %c0_8 = arith.constant 0 : index
    %c0_9 = arith.constant 0 : index
    %c0_10 = arith.constant 0 : index
    %19 = vector.load %arg5[%c0_8, %c0_9, %c0_10] : memref<1x128x128xf32, #tpu.memory_space<vmem>>, vector<1x128x128xf32>
    %20 = vector.shape_cast %19 : vector<1x128x128xf32> to vector<128x128xf32>
    %cst_11 = arith.constant dense<0.000000e+00> : vector<8x128xf32>
    %21 = tpu.matmul %18, %20, %cst_11 {dimension_numbers = #tpu.dot_dimension_numbers<[1], [0], [0], [1], [0, 0, 1, 1], [], []>} : vector<8x128xf32>, vector<128x128xf32>, vector<8x128xf32> -> vector<8x128xf32>
    %c0_12 = arith.constant 0 : index
    %c0_13 = arith.constant 0 : index
    %c0_14 = arith.constant 0 : index
    %22 = vector.load %arg6[%c0_12, %c0_13, %c0_14] : memref<1x1x128xf32, #tpu.memory_space<vmem>>, vector<1x1x128xf32>
    %23 = vector.shape_cast %22 : vector<1x1x128xf32> to vector<1x128xf32>
    %24 = vector.broadcast %23 : vector<1x128xf32> to vector<8x128xf32>
    %25 = arith.addf %21, %24 : vector<8x128xf32>
    %cst_15 = arith.constant 0.000000e+00 : f32
    %26 = vector.broadcast %cst_15 : f32 to vector<8x128xf32>
    %27 = arith.maximumf %25, %26 : vector<8x128xf32>
    %c0_16 = arith.constant 0 : index
    %c0_17 = arith.constant 0 : index
    %28 = vector.load %arg7[%c0_16, %c0_17] : memref<128x128xf32, #tpu.memory_space<vmem>>, vector<128x128xf32>
    %cst_18 = arith.constant dense<0.000000e+00> : vector<8x128xf32>
    %29 = tpu.matmul %27, %28, %cst_18 {dimension_numbers = #tpu.dot_dimension_numbers<[1], [0], [0], [1], [0, 0, 1, 1], [], []>} : vector<8x128xf32>, vector<128x128xf32>, vector<8x128xf32> -> vector<8x128xf32>
    %c0_19 = arith.constant 0 : index
    %c0_20 = arith.constant 0 : index
    %30 = vector.load %arg8[%c0_19, %c0_20] : memref<1x128xf32, #tpu.memory_space<vmem>>, vector<1x128xf32>
    %31 = vector.broadcast %30 : vector<1x128xf32> to vector<8x128xf32>
    %32 = arith.addf %29, %31 : vector<8x128xf32>
    %cst_21 = arith.constant dense<0xFF800000> : vector<8xf32>
    %33 = vector.multi_reduction <maximumf>, %32, %cst_21 [1] : vector<8x128xf32> to vector<8xf32>
    %34 = vector.shape_cast %33 : vector<8xf32> to vector<8x1xf32>
    %35 = vector.broadcast %34 : vector<8x1xf32> to vector<8x128xf32>
    %36 = arith.subf %32, %35 : vector<8x128xf32>
    %37 = math.exp %36 : vector<8x128xf32>
    %cst_22 = arith.constant dense<0.000000e+00> : vector<8xf32>
    %38 = vector.multi_reduction <add>, %37, %cst_22 [1] : vector<8x128xf32> to vector<8xf32>
    %39 = vector.shape_cast %38 : vector<8xf32> to vector<8x1xf32>
    %40 = tpu.reciprocal %39 : vector<8x1xf32> -> vector<8x1xf32>
    %41 = vector.broadcast %40 : vector<8x1xf32> to vector<8x128xf32>
    %42 = arith.mulf %37, %41 : vector<8x128xf32>
    %c0_23 = arith.constant 0 : index
    %c0_24 = arith.constant 0 : index
    %43 = vector.load %arg9[%c0_23, %c0_24] : memref<8x128xf32, #tpu.memory_space<vmem>>, vector<8x128xf32>
    tpu.vector_store %arg9[%c0_23, %c0_24], %42 {strides = array<i32>} : memref<8x128xf32, #tpu.memory_space<vmem>>, vector<8x128xf32>,
    return
  }
  func.func @transform_0(%arg0: i32) -> (i32, i32) {
    %c0_i32 = arith.constant 0 : i32
    %c0_i32_0 = arith.constant 0 : i32
    return %arg0, %c0_i32 : i32, i32
  }
  func.func @transform_1(%arg0: i32) -> (i32, i32) {
    %c0_i32 = arith.constant 0 : i32
    %c0_i32_0 = arith.constant 0 : i32
    return %arg0, %c0_i32 : i32, i32
  }
  func.func @transform_2(%arg0: i32) -> (i32, i32) {
    %c0_i32 = arith.constant 0 : i32
    %c0_i32_0 = arith.constant 0 : i32
    %c0_i32_1 = arith.constant 0 : i32
    return %c0_i32, %c0_i32_0 : i32, i32
  }
  func.func @transform_3(%arg0: i32) -> (i32, i32) {
    %c0_i32 = arith.constant 0 : i32
    %c0_i32_0 = arith.constant 0 : i32
    %c0_i32_1 = arith.constant 0 : i32
    return %c0_i32, %c0_i32_0 : i32, i32
  }
  func.func @transform_4(%arg0: i32) -> (i32, i32, i32) {
    %c0_i32 = arith.constant 0 : i32
    %c0_i32_0 = arith.constant 0 : i32
    %c0_i32_1 = arith.constant 0 : i32
    %c0_i32_2 = arith.constant 0 : i32
    return %c0_i32, %c0_i32_0, %c0_i32_1 : i32, i32, i32
  }
  func.func @transform_5(%arg0: i32) -> (i32, i32, i32) {
    %c0_i32 = arith.constant 0 : i32
    %c0_i32_0 = arith.constant 0 : i32
    %c0_i32_1 = arith.constant 0 : i32
    %c0_i32_2 = arith.constant 0 : i32
    return %c0_i32, %c0_i32_0, %c0_i32_1 : i32, i32, i32
  }
  func.func @transform_6(%arg0: i32) -> (i32, i32) {
    %c0_i32 = arith.constant 0 : i32
    %c0_i32_0 = arith.constant 0 : i32
    %c0_i32_1 = arith.constant 0 : i32
    return %c0_i32, %c0_i32_0 : i32, i32
  }
  func.func @transform_7(%arg0: i32) -> (i32, i32) {
    %c0_i32 = arith.constant 0 : i32
    %c0_i32_0 = arith.constant 0 : i32
    %c0_i32_1 = arith.constant 0 : i32
    return %c0_i32, %c0_i32_0 : i32, i32
  }
  func.func @transform_8(%arg0: i32) -> (i32, i32) {
    %c0_i32 = arith.constant 0 : i32
    %c0_i32_0 = arith.constant 0 : i32
    return %arg0, %c0_i32 : i32, i32
  }
}

</mosaic_0001>

<llo_original>
// kernel: tpu_custom_call.1
$region0: #{tpu_custom_call.1}
  #allocation0 [shape = 'u32[]', space=smem, size = 0x4, offset = 0x4, fixed_abs, tag = 'smem constant byte address 0x4 - core index']
  #allocation1 [shape = 'u32[144,128]{1,0:T(1,128)}', space=vmem, size = 0x12000, scoped, tag = 'internal scratch']
  %s0 = inlined_call_operand.vmem [shape: s32[8,1], index: 0, kind: input, shape index: {}]
  %s1 = inlined_call_operand.vmem [shape: s32[8,1], index: 1, kind: input, shape index: {}]
  %s2 = inlined_call_operand.hbm [shape: f32[256,128], index: 2, kind: input, shape index: {}]
  %s3 = inlined_call_operand.vmem [shape: f32[1,128], index: 3, kind: input, shape index: {}]
  %s4 = inlined_call_operand.hbm [shape: f32[1,128,128], index: 4, kind: input, shape index: {}]
  %s5 = inlined_call_operand.vmem [shape: f32[1,1,128], index: 5, kind: input, shape index: {}]
  %s6 = inlined_call_operand.hbm [shape: f32[128,128], index: 6, kind: input, shape index: {}]
  %s7 = inlined_call_operand.vmem [shape: f32[1,128], index: 7, kind: input, shape index: {}]
  %s8 = inlined_call_operand.hbm [shape: f32[8,128], index: 8, kind: output, shape index: {}]
  %s9 = sld [smem:[#allocation0]]
  $region54: #{tpu_custom_call.1} parent=0
    _
  %s11 = ssub.s32 1, %s9
  %s12 = scalar_select 0, %s11, %s9
  $region1: #{tpu_custom_call.1} parent=0
    #allocation2 [shape = 'u8[131072]{0}', space=vmem, size = 0x20000, scoped, tag = 'input window, operand 2, single buffered']
    #allocation3 [shape = 's32[1]{0}', space=sflag, size = 0x4, scoped, tag = 'scoped memory for tpu_custom_call.1']
    #allocation4 [shape = 's32[1]{0}', space=sflag, size = 0x4, scoped, tag = 'scoped memory for tpu_custom_call.1']
    #allocation5 [shape = 'u8[65536]{0}', space=vmem, size = 0x10000, scoped, tag = 'input window, operand 4, single buffered']
    #allocation6 [shape = 's32[1]{0}', space=sflag, size = 0x4, scoped, tag = 'scoped memory for tpu_custom_call.1']
    #allocation7 [shape = 'u8[65536]{0}', space=vmem, size = 0x10000, scoped, tag = 'input window, operand 6, single buffered']
    #allocation8 [shape = 'u8[4096]{0}', space=vmem, size = 0x1000, scoped, tag = 'output window, operand 0, single buffered']
    %13 = vsyncpa [#allocation3], 0
    %14 = vsyncpa [#allocation6], 0
    %15 = vsyncpa [#allocation4], 0
    // Predicated region
    $region2: #{tpu_custom_call.1} parent=1 // pred_check
      _
    $region3: #{tpu_custom_call.1} parent=1 // pred_check_branch
      %17 = sbr.rel (0) target = $region5
    $region4: #{tpu_custom_call.1} parent=1 // pred_region
      _
    $region5: #{tpu_custom_call.1} parent=1 // pred_fallthru
      _
    // Predicated region
    $region6: #{tpu_custom_call.1} parent=1 // pred_check
      _
    $region7: #{tpu_custom_call.1} parent=1 // pred_check_branch
      %19 = sbr.rel (0) target = $region9
    $region8: #{tpu_custom_call.1} parent=1 // pred_region
      _
    $region9: #{tpu_custom_call.1} parent=1 // pred_fallthru
      _
    // Predicated region
    $region10: #{tpu_custom_call.1} parent=1 // pred_check
      _
    $region11: #{tpu_custom_call.1} parent=1 // pred_check_branch
      %21 = sbr.rel (0) target = $region13
    $region12: #{tpu_custom_call.1} parent=1 // pred_region
      %s23 = ssub.s32 4096, 4096
      %24 = vsyncadd [#allocation3], %s23
      %s25 = sshll.u32 [#allocation2], 4
      %s26 = int_to_ptr.vmem [resolvable:$true] %s25
      %31 = dma.hbm_to_vmem [thread:$0]  %s2, 4096, %s26, [#allocation3], 128, 128, 8
    $region13: #{tpu_custom_call.1} parent=1 // pred_fallthru
      _
    // Predicated region
    $region14: #{tpu_custom_call.1} parent=1 // pred_check
      _
    $region15: #{tpu_custom_call.1} parent=1 // pred_check_branch
      %33 = sbr.rel (0) target = $region17
    $region16: #{tpu_custom_call.1} parent=1 // pred_region
      _
    $region17: #{tpu_custom_call.1} parent=1 // pred_fallthru
      _
    // Predicated region
    $region18: #{tpu_custom_call.1} parent=1 // pred_check
      _
    $region19: #{tpu_custom_call.1} parent=1 // pred_check_branch
      %35 = sbr.rel (0) target = $region21
    $region20: #{tpu_custom_call.1} parent=1 // pred_region
      %s37 = ssub.s32 2048, 2048
      %38 = vsyncadd [#allocation6], %s37
      %s39 = sshll.u32 [#allocation5], 4
      %s40 = int_to_ptr.vmem [resolvable:$true] %s39
      %45 = dma.hbm_to_vmem [thread:$0]  %s4, 2048, %s40, [#allocation6], 128, 128, 8
    $region21: #{tpu_custom_call.1} parent=1 // pred_fallthru
      _
    // Predicated region
    $region22: #{tpu_custom_call.1} parent=1 // pred_check
      _
    $region23: #{tpu_custom_call.1} parent=1 // pred_check_branch
      %47 = sbr.rel (0) target = $region25
    $region24: #{tpu_custom_call.1} parent=1 // pred_region
      _
    $region25: #{tpu_custom_call.1} parent=1 // pred_fallthru
      _
    // Predicated region
    $region26: #{tpu_custom_call.1} parent=1 // pred_check
      _
    $region27: #{tpu_custom_call.1} parent=1 // pred_check_branch
      %49 = sbr.rel (0) target = $region29
    $region28: #{tpu_custom_call.1} parent=1 // pred_region
      %s51 = ssub.s32 2048, 2048
      %52 = vsyncadd [#allocation6], %s51
      %s53 = sshll.u32 [#allocation7], 4
      %s54 = int_to_ptr.vmem [resolvable:$true] %s53
      %59 = dma.hbm_to_vmem [thread:$0]  %s6, 2048, %s54, [#allocation6], 128, 128, 8
    $region29: #{tpu_custom_call.1} parent=1 // pred_fallthru
      _
    // Predicated region
    $region30: #{tpu_custom_call.1} parent=1 // pred_check
      _
    $region31: #{tpu_custom_call.1} parent=1 // pred_check_branch
      %61 = sbr.rel (0) target = $region33
    $region32: #{tpu_custom_call.1} parent=1 // pred_region
      _
    $region33: #{tpu_custom_call.1} parent=1 // pred_fallthru
      _
    // Predicated region
    $region34: #{tpu_custom_call.1} parent=1 // pred_check
      _
    $region35: #{tpu_custom_call.1} parent=1 // pred_check_branch
      %63 = sbr.rel (0) target = $region37
    $region36: #{tpu_custom_call.1} parent=1 // pred_region
      %64 = dma.done [#allocation3], 4096
    $region37: #{tpu_custom_call.1} parent=1 // pred_fallthru
      _
    // Predicated region
    $region38: #{tpu_custom_call.1} parent=1 // pred_check
      _
    $region39: #{tpu_custom_call.1} parent=1 // pred_check_branch
      %66 = sbr.rel (0) target = $region41
    $region40: #{tpu_custom_call.1} parent=1 // pred_region
      %67 = dma.done [#allocation6], 2048
    $region41: #{tpu_custom_call.1} parent=1 // pred_fallthru
      _
    // Predicated region
    $region42: #{tpu_custom_call.1} parent=1 // pred_check
      _
    $region43: #{tpu_custom_call.1} parent=1 // pred_check_branch
      %69 = sbr.rel (0) target = $region45
    $region44: #{tpu_custom_call.1} parent=1 // pred_region
      %70 = dma.done [#allocation6], 2048
    $region45: #{tpu_custom_call.1} parent=1 // pred_fallthru
      _
    %v71 = vlaneseq
    %v72 = vand.u32 %v71, 127
    %v73 = vadd.s32 %v72, 128
    %v74 = vld [vmem:[%s0] sm:$0xff]
    %75 = vset.pattern.permute.xlu0 0
    %76 = vperm.xlu0 %75, %v74
    %v77 = vpop.permute.xlu0 %76
    %vm78 = vcmp.eq.s32.totalorder %v72, %v77
    %vm79 = vcmp.eq.s32.totalorder %v73, %v77
    %v80 = vld [vmem:[%s1] sm:$0xff]
    %v81 = vadd.s32 %v80, 128
    %82 = vset.pattern.permute.xlu0 0
    %83 = vperm.xlu0 %82, %v81
    %v84 = vpop.permute.xlu0 %83
    %vm85 = vcmp.eq.s32.totalorder %v72, %v84
    %vm86 = vcmp.eq.s32.totalorder %v73, %v84
    %vm87 = vmor %vm78, %vm85
    %vm88 = vmor %vm79, %vm86
    %v89 = vsel %vm87, 1, 0
    %v90 = vsel %vm88, 1, 0
    %v91 = vcvt.s32.f32 %v89
    %v92 = vcvt.s32.f32 %v90
    %v93 = vld [vmem:[#allocation2] sm:$0xff]
    %v94 = vld [vmem:[#allocation2 + $0x8] sm:$0xff]
    %v95 = vld [vmem:[#allocation2 + $0x10] sm:$0xff]
    %v96 = vld [vmem:[#allocation2 + $0x18] sm:$0xff]
    %v97 = vld [vmem:[#allocation2 + $0x20] sm:$0xff]
    %v98 = vld [vmem:[#allocation2 + $0x28] sm:$0xff]
    %v99 = vld [vmem:[#allocation2 + $0x30] sm:$0xff]
    %v100 = vld [vmem:[#allocation2 + $0x38] sm:$0xff]
    %v101 = vld [vmem:[#allocation2 + $0x40] sm:$0xff]
    %v102 = vld [vmem:[#allocation2 + $0x48] sm:$0xff]
    %v103 = vld [vmem:[#allocation2 + $0x50] sm:$0xff]
    %v104 = vld [vmem:[#allocation2 + $0x58] sm:$0xff]
    %v105 = vld [vmem:[#allocation2 + $0x60] sm:$0xff]
    %v106 = vld [vmem:[#allocation2 + $0x68] sm:$0xff]
    %v107 = vld [vmem:[#allocation2 + $0x70] sm:$0xff]
    %v108 = vld [vmem:[#allocation2 + $0x78] sm:$0xff]
    %v109 = vld [vmem:[#allocation2 + $0x80] sm:$0xff]
    %v110 = vld [vmem:[#allocation2 + $0x88] sm:$0xff]
    %v111 = vld [vmem:[#allocation2 + $0x90] sm:$0xff]
    %v112 = vld [vmem:[#allocation2 + $0x98] sm:$0xff]
    %v113 = vld [vmem:[#allocation2 + $0xa0] sm:$0xff]
    %v114 = vld [vmem:[#allocation2 + $0xa8] sm:$0xff]
    %v115 = vld [vmem:[#allocation2 + $0xb0] sm:$0xff]
    %v116 = vld [vmem:[#allocation2 + $0xb8] sm:$0xff]
    %v117 = vld [vmem:[#allocation2 + $0xc0] sm:$0xff]
    %v118 = vld [vmem:[#allocation2 + $0xc8] sm:$0xff]
    %v119 = vld [vmem:[#allocation2 + $0xd0] sm:$0xff]
    %v120 = vld [vmem:[#allocation2 + $0xd8] sm:$0xff]
    %v121 = vld [vmem:[#allocation2 + $0xe0] sm:$0xff]
    %v122 = vld [vmem:[#allocation2 + $0xe8] sm:$0xff]
    %v123 = vld [vmem:[#allocation2 + $0xf0] sm:$0xff]
    %v124 = vld [vmem:[#allocation2 + $0xf8] sm:$0xff]
    %v125 = vld [vmem:[%s3] sm:$0x1]
    %v127 = vlaneseq
    %v128 = vshrl.u32 %v127, 7
    %v129 = vsub.s32 0, %v128
    %v130 = vrot.slane %v125, %v129
    %132 = vmatprep.subr.mxu0 0.0
    %133 = vmatpush1.msra.mxu0 %v93
    %134 = vmatprep.subr.mxu0 0.0
    %135 = vmatpush1.msra.mxu0 %v94
    %136 = vmatprep.subr.mxu0 0.0
    %137 = vmatpush1.msra.mxu0 %v95
    %138 = vmatprep.subr.mxu0 0.0
    %139 = vmatpush1.msra.mxu0 %v96
    %140 = vmatprep.subr.mxu0 0.0
    %141 = vmatpush1.msra.mxu0 %v97
    %142 = vmatprep.subr.mxu0 0.0
    %143 = vmatpush1.msra.mxu0 %v98
    %144 = vmatprep.subr.mxu0 0.0
    %145 = vmatpush1.msra.mxu0 %v99
    %146 = vmatprep.subr.mxu0 0.0
    %147 = vmatpush1.msra.mxu0 %v100
    %148 = vmatprep.subr.mxu0 0.0
    %149 = vmatpush1.msra.mxu0 %v101
    %150 = vmatprep.subr.mxu0 0.0
    %151 = vmatpush1.msra.mxu0 %v102
    %152 = vmatprep.subr.mxu0 0.0
    %153 = vmatpush1.msra.mxu0 %v103
    %154 = vmatprep.subr.mxu0 0.0
    %155 = vmatpush1.msra.mxu0 %v104
    %156 = vmatprep.subr.mxu0 0.0
    %157 = vmatpush1.msra.mxu0 %v105
    %158 = vmatprep.subr.mxu0 0.0
    %159 = vmatpush1.msra.mxu0 %v106
    %160 = vmatprep.subr.mxu0 0.0
    %161 = vmatpush1.msra.mxu0 %v107
    %162 = vmatprep.subr.mxu0 0.0
    %163 = vmatpush1.msra.mxu0 %v108
    %164 = vmatprep.subr.mxu0 0.0
    %165 = vmatpush1.msra.mxu0 %v109
    %166 = vmatprep.subr.mxu0 0.0
    %167 = vmatpush1.msra.mxu0 %v110
    %168 = vmatprep.subr.mxu0 0.0
    %169 = vmatpush1.msra.mxu0 %v111
    %170 = vmatprep.subr.mxu0 0.0
    %171 = vmatpush1.msra.mxu0 %v112
    %172 = vmatprep.subr.mxu0 0.0
    %173 = vmatpush1.msra.mxu0 %v113
    %174 = vmatprep.subr.mxu0 0.0
    %175 = vmatpush1.msra.mxu0 %v114
    %176 = vmatprep.subr.mxu0 0.0
    %177 = vmatpush1.msra.mxu0 %v115
    %178 = vmatprep.subr.mxu0 0.0
    %179 = vmatpush1.msra.mxu0 %v116
    %180 = vmatprep.subr.mxu0 0.0
    %181 = vmatpush1.msra.mxu0 %v117
    %182 = vmatprep.subr.mxu0 0.0
    %183 = vmatpush1.msra.mxu0 %v118
    %184 = vmatprep.subr.mxu0 0.0
    %185 = vmatpush1.msra.mxu0 %v119
    %186 = vmatprep.subr.mxu0 0.0
    %187 = vmatpush1.msra.mxu0 %v120
    %188 = vmatprep.subr.mxu0 0.0
    %189 = vmatpush1.msra.mxu0 %v121
    %190 = vmatprep.subr.mxu0 0.0
    %191 = vmatpush1.msra.mxu0 %v122
    %192 = vmatprep.subr.mxu0 0.0
    %193 = vmatpush1.msra.mxu0 %v123
    %194 = vmatprep.subr.mxu0 0.0
    %195 = vmatpush1.msra.mxu0 %v124
    %196 = vmatprep.mubr.f32.mxu0 %v92
    %197 = vmatmul.mubr.f32.gmra.mrb[0].mxu0 %v91
    %v198 = vpop.f32.mrb[0].mxu0
    %v199 = vadd.f32 %v130, %v198
    %v200 = vpop.f32.mrb[0].mxu0
    %201 = vdwg.mxu0
    %v202 = vmax.f32 %v199, 0.0
    %v203 = vld [vmem:[#allocation5] sm:$0xff]
    %v204 = vld [vmem:[#allocation5 + $0x8] sm:$0xff]
    %v205 = vld [vmem:[#allocation5 + $0x10] sm:$0xff]
    %v206 = vld [vmem:[#allocation5 + $0x18] sm:$0xff]
    %v207 = vld [vmem:[#allocation5 + $0x20] sm:$0xff]
    %v208 = vld [vmem:[#allocation5 + $0x28] sm:$0xff]
    %v209 = vld [vmem:[#allocation5 + $0x30] sm:$0xff]
    %v210 = vld [vmem:[#allocation5 + $0x38] sm:$0xff]
    %v211 = vld [vmem:[#allocation5 + $0x40] sm:$0xff]
    %v212 = vld [vmem:[#allocation5 + $0x48] sm:$0xff]
    %v213 = vld [vmem:[#allocation5 + $0x50] sm:$0xff]
    %v214 = vld [vmem:[#allocation5 + $0x58] sm:$0xff]
    %v215 = vld [vmem:[#allocation5 + $0x60] sm:$0xff]
    %v216 = vld [vmem:[#allocation5 + $0x68] sm:$0xff]
    %v217 = vld [vmem:[#allocation5 + $0x70] sm:$0xff]
    %v218 = vld [vmem:[#allocation5 + $0x78] sm:$0xff]
    %v219 = vld [vmem:[%s5] sm:$0x1]
    %v221 = vlaneseq
    %v222 = vshrl.u32 %v221, 7
    %v223 = vsub.s32 0, %v222
    %v224 = vrot.slane %v219, %v223
    %226 = vmatprep.subr.mxu0 0.0
    %227 = vmatpush1.msra.mxu0 %v203
    %228 = vmatprep.subr.mxu0 0.0
    %229 = vmatpush1.msra.mxu0 %v204
    %230 = vmatprep.subr.mxu0 0.0
    %231 = vmatpush1.msra.mxu0 %v205
    %232 = vmatprep.subr.mxu0 0.0
    %233 = vmatpush1.msra.mxu0 %v206
    %234 = vmatprep.subr.mxu0 0.0
    %235 = vmatpush1.msra.mxu0 %v207
    %236 = vmatprep.subr.mxu0 0.0
    %237 = vmatpush1.msra.mxu0 %v208
    %238 = vmatprep.subr.mxu0 0.0
    %239 = vmatpush1.msra.mxu0 %v209
    %240 = vmatprep.subr.mxu0 0.0
    %241 = vmatpush1.msra.mxu0 %v210
    %242 = vmatprep.subr.mxu0 0.0
    %243 = vmatpush1.msra.mxu0 %v211
    %244 = vmatprep.subr.mxu0 0.0
    %245 = vmatpush1.msra.mxu0 %v212
    %246 = vmatprep.subr.mxu0 0.0
    %247 = vmatpush1.msra.mxu0 %v213
    %248 = vmatprep.subr.mxu0 0.0
    %249 = vmatpush1.msra.mxu0 %v214
    %250 = vmatprep.subr.mxu0 0.0
    %251 = vmatpush1.msra.mxu0 %v215
    %252 = vmatprep.subr.mxu0 0.0
    %253 = vmatpush1.msra.mxu0 %v216
    %254 = vmatprep.subr.mxu0 0.0
    %255 = vmatpush1.msra.mxu0 %v217
    %256 = vmatprep.subr.mxu0 0.0
    %257 = vmatpush1.msra.mxu0 %v218
    %258 = vmatprep.subr.mxu0 0.0
    %259 = vmatpush1.msra.mxu0 0.0
    %260 = vmatprep.subr.mxu0 0.0
    %261 = vmatpush1.msra.mxu0 0.0
    %262 = vmatprep.subr.mxu0 0.0
    %263 = vmatpush1.msra.mxu0 0.0
    %264 = vmatprep.subr.mxu0 0.0
    %265 = vmatpush1.msra.mxu0 0.0
    %266 = vmatprep.subr.mxu0 0.0
    %267 = vmatpush1.msra.mxu0 0.0
    %268 = vmatprep.subr.mxu0 0.0
    %269 = vmatpush1.msra.mxu0 0.0
    %270 = vmatprep.subr.mxu0 0.0
    %271 = vmatpush1.msra.mxu0 0.0
    %272 = vmatprep.subr.mxu0 0.0
    %273 = vmatpush1.msra.mxu0 0.0
    %274 = vmatprep.subr.mxu0 0.0
    %275 = vmatpush1.msra.mxu0 0.0
    %276 = vmatprep.subr.mxu0 0.0
    %277 = vmatpush1.msra.mxu0 0.0
    %278 = vmatprep.subr.mxu0 0.0
    %279 = vmatpush1.msra.mxu0 0.0
    %280 = vmatprep.subr.mxu0 0.0
    %281 = vmatpush1.msra.mxu0 0.0
    %282 = vmatprep.subr.mxu0 0.0
    %283 = vmatpush1.msra.mxu0 0.0
    %284 = vmatprep.subr.mxu0 0.0
    %285 = vmatpush1.msra.mxu0 0.0
    %286 = vmatprep.subr.mxu0 0.0
    %287 = vmatpush1.msra.mxu0 0.0
    %288 = vmatprep.subr.mxu0 0.0
    %289 = vmatpush1.msra.mxu0 0.0
    %290 = vmatprep.mubr.f32.mxu0 0.0
    %291 = vmatmul.mubr.f32.gmra.mrb[0].mxu0 %v202
    %v292 = vpop.f32.mrb[0].mxu0
    %v293 = vadd.f32 %v224, %v292
    %v294 = vpop.f32.mrb[0].mxu0
    %295 = vdwg.mxu0
    %v296 = vmax.f32 %v293, 0.0
    %v297 = vld [vmem:[#allocation7] sm:$0xff]
    %v298 = vld [vmem:[#allocation7 + $0x8] sm:$0xff]
    %v299 = vld [vmem:[#allocation7 + $0x10] sm:$0xff]
    %v300 = vld [vmem:[#allocation7 + $0x18] sm:$0xff]
    %v301 = vld [vmem:[#allocation7 + $0x20] sm:$0xff]
    %v302 = vld [vmem:[#allocation7 + $0x28] sm:$0xff]
    %v303 = vld [vmem:[#allocation7 + $0x30] sm:$0xff]
    %v304 = vld [vmem:[#allocation7 + $0x38] sm:$0xff]
    %v305 = vld [vmem:[#allocation7 + $0x40] sm:$0xff]
    %v306 = vld [vmem:[#allocation7 + $0x48] sm:$0xff]
    %v307 = vld [vmem:[#allocation7 + $0x50] sm:$0xff]
    %v308 = vld [vmem:[#allocation7 + $0x58] sm:$0xff]
    %v309 = vld [vmem:[#allocation7 + $0x60] sm:$0xff]
    %v310 = vld [vmem:[#allocation7 + $0x68] sm:$0xff]
    %v311 = vld [vmem:[#allocation7 + $0x70] sm:$0xff]
    %v312 = vld [vmem:[#allocation7 + $0x78] sm:$0xff]
    %v313 = vld [vmem:[%s7] sm:$0x1]
    %v315 = vlaneseq
    %v316 = vshrl.u32 %v315, 7
    %v317 = vsub.s32 0, %v316
    %v318 = vrot.slane %v313, %v317
    %320 = vmatprep.subr.mxu0 0.0
    %321 = vmatpush1.msra.mxu0 %v297
    %322 = vmatprep.subr.mxu0 0.0
    %323 = vmatpush1.msra.mxu0 %v298
    %324 = vmatprep.subr.mxu0 0.0
    %325 = vmatpush1.msra.mxu0 %v299
    %326 = vmatprep.subr.mxu0 0.0
    %327 = vmatpush1.msra.mxu0 %v300
    %328 = vmatprep.subr.mxu0 0.0
    %329 = vmatpush1.msra.mxu0 %v301
    %330 = vmatprep.subr.mxu0 0.0
    %331 = vmatpush1.msra.mxu0 %v302
    %332 = vmatprep.subr.mxu0 0.0
    %333 = vmatpush1.msra.mxu0 %v303
    %334 = vmatprep.subr.mxu0 0.0
    %335 = vmatpush1.msra.mxu0 %v304
    %336 = vmatprep.subr.mxu0 0.0
    %337 = vmatpush1.msra.mxu0 %v305
    %338 = vmatprep.subr.mxu0 0.0
    %339 = vmatpush1.msra.mxu0 %v306
    %340 = vmatprep.subr.mxu0 0.0
    %341 = vmatpush1.msra.mxu0 %v307
    %342 = vmatprep.subr.mxu0 0.0
    %343 = vmatpush1.msra.mxu0 %v308
    %344 = vmatprep.subr.mxu0 0.0
    %345 = vmatpush1.msra.mxu0 %v309
    %346 = vmatprep.subr.mxu0 0.0
    %347 = vmatpush1.msra.mxu0 %v310
    %348 = vmatprep.subr.mxu0 0.0
    %349 = vmatpush1.msra.mxu0 %v311
    %350 = vmatprep.subr.mxu0 0.0
    %351 = vmatpush1.msra.mxu0 %v312
    %352 = vmatprep.subr.mxu0 0.0
    %353 = vmatpush1.msra.mxu0 0.0
    %354 = vmatprep.subr.mxu0 0.0
    %355 = vmatpush1.msra.mxu0 0.0
    %356 = vmatprep.subr.mxu0 0.0
    %357 = vmatpush1.msra.mxu0 0.0
    %358 = vmatprep.subr.mxu0 0.0
    %359 = vmatpush1.msra.mxu0 0.0
    %360 = vmatprep.subr.mxu0 0.0
    %361 = vmatpush1.msra.mxu0 0.0
    %362 = vmatprep.subr.mxu0 0.0
    %363 = vmatpush1.msra.mxu0 0.0
    %364 = vmatprep.subr.mxu0 0.0
    %365 = vmatpush1.msra.mxu0 0.0
    %366 = vmatprep.subr.mxu0 0.0
    %367 = vmatpush1.msra.mxu0 0.0
    %368 = vmatprep.subr.mxu0 0.0
    %369 = vmatpush1.msra.mxu0 0.0
    %370 = vmatprep.subr.mxu0 0.0
    %371 = vmatpush1.msra.mxu0 0.0
    %372 = vmatprep.subr.mxu0 0.0
    %373 = vmatpush1.msra.mxu0 0.0
    %374 = vmatprep.subr.mxu0 0.0
    %375 = vmatpush1.msra.mxu0 0.0
    %376 = vmatprep.subr.mxu0 0.0
    %377 = vmatpush1.msra.mxu0 0.0
    %378 = vmatprep.subr.mxu0 0.0
    %379 = vmatpush1.msra.mxu0 0.0
    %380 = vmatprep.subr.mxu0 0.0
    %381 = vmatpush1.msra.mxu0 0.0
    %382 = vmatprep.subr.mxu0 0.0
    %383 = vmatpush1.msra.mxu0 0.0
    %384 = vmatprep.mubr.f32.mxu0 0.0
    %385 = vmatmul.mubr.f32.gmra.mrb[0].mxu0 %v296
    %v386 = vpop.f32.mrb[0].mxu0
    %v387 = vadd.f32 %v318, %v386
    %v388 = vpop.f32.mrb[0].mxu0
    %389 = vdwg.mxu0
    %390 = vmax.xlane.f32.xlu0 %v387
    %v391 = vpop.xlane.xlu0 %390
    %v392 = vsub.f32 %v387, %v391
    %v393 = vmul.f32 %v392, 1.442695
    %v394 = vpow.pop %v393
    %395 = vadd.xlane.f32.xlu0 %v394
    %v396 = vpop.xlane.xlu0 %395
    %v397 = vrcp.pop %v396
    %v398 = vmul.f32 %v394, %v397
    %399 = vst [vmem:[#allocation8] sm:$0xff] %v398
    // Predicated region
    $region46: #{tpu_custom_call.1} parent=1 // pred_check
      _
    $region47: #{tpu_custom_call.1} parent=1 // pred_check_branch
      %401 = sbr.rel (0) target = $region49
    $region48: #{tpu_custom_call.1} parent=1 // pred_region
      %s403 = ssub.s32 128, 128
      %404 = vsyncadd [#allocation4], %s403
      %s406 = sshll.u32 [#allocation8], 4
      %s407 = int_to_ptr.vmem [resolvable:$true] %s406
      %409 = dma.vmem_to_hbm [thread:$0]  %s407, 128, %s8, [#allocation4]
    $region49: #{tpu_custom_call.1} parent=1 // pred_fallthru
      _
    // Predicated region
    $region50: #{tpu_custom_call.1} parent=1 // pred_check
      _
    $region51: #{tpu_custom_call.1} parent=1 // pred_check_branch
      %411 = sbr.rel (0) target = $region53
    $region52: #{tpu_custom_call.1} parent=1 // pred_region
      %412 = dma.done [#allocation4], 128
    $region53: #{tpu_custom_call.1} parent=1 // pred_fallthru
      _
    %413 = vsyncpa [#allocation3], 1
    %414 = vsyncpa [#allocation6], 1
    %415 = vsyncpa [#allocation4], 1

</llo_original>
